<compile_context>
chip_gen: v6e
topology: v6e:2x2x1
jax: 0.10.0
libtpu: 0.0.40
codegen_flags: <defaults>
</compile_context>

<pallas_src>
import functools

import jax
import jax.numpy as jnp
from jax.experimental import pallas as pl
from jax.experimental.pallas import tpu as pltpu


def personal_net_kernel(x_ref, w2_ref, b2_ref, w3_ref, b3_ref, o_ref, *,
                        compute_dtype):
    # Cast the x tile in VMEM (no separate HBM pass for the convert).
    x = x_ref[...].astype(compute_dtype)
    # fc2: bf16 MXU matmul, f32 accumulation; bias + ReLU in f32 on the VPU.
    h = jnp.dot(x, w2_ref[...], preferred_element_type=jnp.float32)
    h = jnp.maximum(h + b2_ref[...], 0.0)
    # fc3: downcast activation to compute dtype (standard mixed precision),
    # accumulate in f32, add bias in f32.
    o = jnp.dot(h.astype(compute_dtype), w3_ref[...],
                preferred_element_type=jnp.float32)
    o_ref[...] = (o + b3_ref[...]).astype(o_ref.dtype)


def _round_up(a: int, m: int) -> int:
    return ((a + m - 1) // m) * m


@functools.partial(jax.jit, static_argnames=("tb_max", "compute_dtype"))
def personal_net(x, w2, b2, w3, b3, *, tb_max=512, compute_dtype=jnp.bfloat16):
    """x: [B, 120] f32 -> [B, 10] f32.

    - Batch axis is tiled with tb <= tb_max (8-aligned), grid = ceil(B / tb).
      Pallas double-buffers the x / out DMAs; weights/biases are VMEM-resident
      (constant index_map).  The batch axis is marked "parallel" so v7x can
      shard grid steps across its two TensorCores.
    - x enters the kernel in its original dtype and is cast to bf16 in VMEM:
      the only HBM read of x is the kernel's own tile DMA.
    - No padding: the last (possibly partial) block is clamped on read and its
      out-of-bounds rows are masked on writeback.
    """
    B, d_in = x.shape
    hidden = w2.shape[1]
    d_out = w3.shape[1]
    out_dtype = x.dtype

    # Biases as (1, features) f32 regardless of how the caller stored them.
    b2f = jnp.asarray(b2, jnp.float32).reshape(1, hidden)
    b3f = jnp.asarray(b3, jnp.float32).reshape(1, d_out)
    # Weights are tiny (~11K params) and VMEM-resident: cast once outside.
    w2c = w2.astype(compute_dtype)
    w3c = w3.astype(compute_dtype)

    # Batch tile: 8-aligned, capped so big batches get several grid steps.
    tb_cap = _round_up(max(int(tb_max), 8), 8)
    tb = min(tb_cap, _round_up(B, 8))
    if tb >= B:
        # Single block covering the whole batch: block dim == full array dim,
        # so the sublane-alignment rule is satisfied even if B % 8 != 0.
        tb = B
    grid = (pl.cdiv(B, tb),)

    kernel = functools.partial(personal_net_kernel, compute_dtype=compute_dtype)

    out = pl.pallas_call(
        kernel,
        out_shape=jax.ShapeDtypeStruct((B, d_out), out_dtype),
        grid=grid,
        in_specs=[
            pl.BlockSpec((tb, d_in), lambda i: (i, 0)),      # x: streamed per tile
            pl.BlockSpec((d_in, hidden), lambda i: (0, 0)),  # W2: resident
            pl.BlockSpec((1, hidden), lambda i: (0, 0)),     # b2: resident
            pl.BlockSpec((hidden, d_out), lambda i: (0, 0)), # W3: resident
            pl.BlockSpec((1, d_out), lambda i: (0, 0)),      # b3: resident
        ],
        out_specs=pl.BlockSpec((tb, d_out), lambda i: (i, 0)),
        compiler_params=pltpu.CompilerParams(
            dimension_semantics=("parallel",)),
    )(x, w2c, b2f, w3c, b3f)

    return out


def init_params(key):
    """Deterministic init mimicking PyTorch nn.Linear default (uniform +-1/sqrt(fan_in))."""
    k1, k2, k3, k4 = jax.random.split(key, 4)
    bound2 = 1.0 / jnp.sqrt(120.0)
    bound3 = 1.0 / jnp.sqrt(84.0)
    w2 = jax.random.uniform(k1, (120, 84), jnp.float32, -bound2, bound2)
    b2 = jax.random.uniform(k2, (1, 84), jnp.float32, -bound2, bound2)
    w3 = jax.random.uniform(k3, (84, 10), jnp.float32, -bound3, bound3)
    b3 = jax.random.uniform(k4, (1, 10), jnp.float32, -bound3, bound3)
    return w2, b2, w3, b3


def _reference(x, w2, b2, w3, b3):
    return jnp.maximum(x @ w2 + b2, 0.0) @ w3 + b3


if __name__ == "__main__":
    key = jax.random.PRNGKey(0)
    kx, kp, kx2 = jax.random.split(key, 3)
    w2, b2, w3, b3 = init_params(kp)

    # Small case: B=8 (single grid step, block == full batch).
    B = 8
    x = jax.random.normal(kx, (B, 120), jnp.float32)
    out = jax.block_until_ready(personal_net(x, w2, b2, w3, b3))
    ref = _reference(x, w2, b2, w3, b3)
    assert out.shape == (B, 10)
    assert jnp.allclose(out, ref, atol=3e-2, rtol=3e-2), (
        float(jnp.max(jnp.abs(out - ref))))

    # Multi-step grid with a ragged last block: B=300, tb=128 -> 3 steps (128,128,44).
    B2 = 300
    x2 = jax.random.normal(kx2, (B2, 120), jnp.float32)
    out2 = jax.block_until_ready(
        personal_net(x2, w2, b2, w3, b3, tb_max=128))
    ref2 = _reference(x2, w2, b2, w3, b3)
    assert out2.shape == (B2, 10)
    assert jnp.allclose(out2, ref2, atol=3e-2, rtol=3e-2), (
        float(jnp.max(jnp.abs(out2 - ref2))))

    # 1-D bias path (PyTorch-style) must also work.
    out3 = jax.block_until_ready(
        personal_net(x, w2, b2.reshape(-1), w3, b3.reshape(-1)))
    assert jnp.allclose(out3, ref, atol=3e-2, rtol=3e-2)

    print("KERNEL_OK")
</pallas_src>

<mosaic_0001>
module attributes {stable_mosaic.version = 11 : i64} {
  func.func @personal_net_kernel(%arg0: i32, %arg1: memref<8x120xf32, #tpu.memory_space<vmem>>, %arg2: memref<120x84xbf16, #tpu.memory_space<vmem>>, %arg3: memref<1x84xf32, #tpu.memory_space<vmem>>, %arg4: memref<84x10xbf16, #tpu.memory_space<vmem>>, %arg5: memref<1x10xf32, #tpu.memory_space<vmem>>, %arg6: memref<8x10xf32, #tpu.memory_space<vmem>>) attributes {dimension_semantics = [#tpu.dimension_semantics<parallel>], iteration_bounds = array<i64: 1>, scalar_prefetch = 0 : i64, scratch_operands = 0 : i64, tpu.core_type = #tpu.core_type<tc>, window_params = [{transform_indices = @transform_0, window_bounds = array<i64: 8, 120>}, {pipeline_mode = #tpu.pipeline_mode<synchronous>, transform_indices = @transform_1, window_bounds = array<i64: 120, 84>}, {pipeline_mode = #tpu.pipeline_mode<synchronous>, transform_indices = @transform_2, window_bounds = array<i64: 1, 84>}, {pipeline_mode = #tpu.pipeline_mode<synchronous>, transform_indices = @transform_3, window_bounds = array<i64: 84, 10>}, {pipeline_mode = #tpu.pipeline_mode<synchronous>, transform_indices = @transform_4, window_bounds = array<i64: 1, 10>}, {transform_indices = @transform_5, window_bounds = array<i64: 8, 10>}]} {
    %c0 = arith.constant 0 : index
    %c0_0 = arith.constant 0 : index
    %0 = vector.load %arg1[%c0, %c0_0] : memref<8x120xf32, #tpu.memory_space<vmem>>, vector<8x120xf32>
    %1 = arith.truncf %0 : vector<8x120xf32> to vector<8x120xbf16>
    %c0_1 = arith.constant 0 : index
    %c0_2 = arith.constant 0 : index
    %2 = vector.load %arg2[%c0_1, %c0_2] : memref<120x84xbf16, #tpu.memory_space<vmem>>, vector<120x84xbf16>
    %cst = arith.constant dense<0.000000e+00> : vector<8x84xf32>
    %3 = tpu.matmul %1, %2, %cst {dimension_numbers = #tpu.dot_dimension_numbers<[1], [0], [0], [1], [0, 0, 1, 1], [], []>} : vector<8x120xbf16>, vector<120x84xbf16>, vector<8x84xf32> -> vector<8x84xf32>
    %c0_3 = arith.constant 0 : index
    %c0_4 = arith.constant 0 : index
    %4 = vector.load %arg3[%c0_3, %c0_4] : memref<1x84xf32, #tpu.memory_space<vmem>>, vector<1x84xf32>
    %5 = vector.broadcast %4 : vector<1x84xf32> to vector<8x84xf32>
    %6 = arith.addf %3, %5 : vector<8x84xf32>
    %cst_5 = arith.constant 0.000000e+00 : f32
    %7 = vector.broadcast %cst_5 : f32 to vector<8x84xf32>
    %8 = arith.maximumf %6, %7 : vector<8x84xf32>
    %9 = arith.truncf %8 : vector<8x84xf32> to vector<8x84xbf16>
    %c0_6 = arith.constant 0 : index
    %c0_7 = arith.constant 0 : index
    %10 = vector.load %arg4[%c0_6, %c0_7] : memref<84x10xbf16, #tpu.memory_space<vmem>>, vector<84x10xbf16>
    %cst_8 = arith.constant dense<0.000000e+00> : vector<8x10xf32>
    %11 = tpu.matmul %9, %10, %cst_8 {dimension_numbers = #tpu.dot_dimension_numbers<[1], [0], [0], [1], [0, 0, 1, 1], [], []>} : vector<8x84xbf16>, vector<84x10xbf16>, vector<8x10xf32> -> vector<8x10xf32>
    %c0_9 = arith.constant 0 : index
    %c0_10 = arith.constant 0 : index
    %12 = vector.load %arg5[%c0_9, %c0_10] : memref<1x10xf32, #tpu.memory_space<vmem>>, vector<1x10xf32>
    %13 = vector.broadcast %12 : vector<1x10xf32> to vector<8x10xf32>
    %14 = arith.addf %11, %13 : vector<8x10xf32>
    %c0_11 = arith.constant 0 : index
    %c0_12 = arith.constant 0 : index
    %15 = vector.load %arg6[%c0_11, %c0_12] : memref<8x10xf32, #tpu.memory_space<vmem>>, vector<8x10xf32>
    tpu.vector_store %arg6[%c0_11, %c0_12], %14 {strides = array<i32>} : memref<8x10xf32, #tpu.memory_space<vmem>>, vector<8x10xf32>,
    return
  }
  func.func @transform_0(%arg0: i32) -> (i32, i32) {
    %c0_i32 = arith.constant 0 : i32
    %c0_i32_0 = arith.constant 0 : i32
    return %arg0, %c0_i32 : i32, i32
  }
  func.func @transform_1(%arg0: i32) -> (i32, i32) {
    %c0_i32 = arith.constant 0 : i32
    %c0_i32_0 = arith.constant 0 : i32
    %c0_i32_1 = arith.constant 0 : i32
    return %c0_i32, %c0_i32_0 : i32, i32
  }
  func.func @transform_2(%arg0: i32) -> (i32, i32) {
    %c0_i32 = arith.constant 0 : i32
    %c0_i32_0 = arith.constant 0 : i32
    %c0_i32_1 = arith.constant 0 : i32
    return %c0_i32, %c0_i32_0 : i32, i32
  }
  func.func @transform_3(%arg0: i32) -> (i32, i32) {
    %c0_i32 = arith.constant 0 : i32
    %c0_i32_0 = arith.constant 0 : i32
    %c0_i32_1 = arith.constant 0 : i32
    return %c0_i32, %c0_i32_0 : i32, i32
  }
  func.func @transform_4(%arg0: i32) -> (i32, i32) {
    %c0_i32 = arith.constant 0 : i32
    %c0_i32_0 = arith.constant 0 : i32
    %c0_i32_1 = arith.constant 0 : i32
    return %c0_i32, %c0_i32_0 : i32, i32
  }
  func.func @transform_5(%arg0: i32) -> (i32, i32) {
    %c0_i32 = arith.constant 0 : i32
    %c0_i32_0 = arith.constant 0 : i32
    return %arg0, %c0_i32 : i32, i32
  }
}

</mosaic_0001>

<llo_original>
// kernel: personal_net.1
$region0: #{personal_net.1}
  #allocation0 [shape = 'u32[]', space=smem, size = 0x4, offset = 0x4, fixed_abs, tag = 'smem constant byte address 0x4 - core index']
  #allocation1 [shape = 'u32[144,128]{1,0:T(1,128)}', space=vmem, size = 0x12000, scoped, tag = 'internal scratch']
  %s0 = inlined_call_operand.vmem [shape: f32[8,120], index: 0, kind: input, shape index: {}]
  %s1 = inlined_call_operand.vmem [shape: bf16[120,84], index: 1, kind: input, shape index: {}]
  %s2 = inlined_call_operand.vmem [shape: f32[1,84], index: 2, kind: input, shape index: {}]
  %s3 = inlined_call_operand.vmem [shape: bf16[84,10], index: 3, kind: input, shape index: {}]
  %s4 = inlined_call_operand.vmem [shape: f32[1,10], index: 4, kind: input, shape index: {}]
  %s5 = inlined_call_operand.hbm [shape: f32[8,10], index: 5, kind: output, shape index: {}]
  %s6 = sld [smem:[#allocation0]]
  $region30: #{personal_net.1} parent=0
    _
  %s8 = ssub.s32 1, %s6
  %s9 = scalar_select 0, %s8, %s6
  $region1: #{personal_net.1} parent=0
    #allocation2 [shape = 'u8[4096]{0}', space=vmem, size = 0x1000, scoped, tag = 'output window, operand 0, single buffered']
    #allocation3 [shape = 's32[1]{0}', space=sflag, size = 0x4, scoped, tag = 'scoped memory for personal_net.1']
    %10 = vsyncpa [#allocation3], 0
    // Predicated region
    $region2: #{personal_net.1} parent=1 // pred_check
      _
    $region3: #{personal_net.1} parent=1 // pred_check_branch
      %12 = sbr.rel (0) target = $region5
    $region4: #{personal_net.1} parent=1 // pred_region
      _
    $region5: #{personal_net.1} parent=1 // pred_fallthru
      _
    // Predicated region
    $region6: #{personal_net.1} parent=1 // pred_check
      _
    $region7: #{personal_net.1} parent=1 // pred_check_branch
      %14 = sbr.rel (0) target = $region9
    $region8: #{personal_net.1} parent=1 // pred_region
      _
    $region9: #{personal_net.1} parent=1 // pred_fallthru
      _
    // Predicated region
    $region10: #{personal_net.1} parent=1 // pred_check
      _
    $region11: #{personal_net.1} parent=1 // pred_check_branch
      %16 = sbr.rel (0) target = $region13
    $region12: #{personal_net.1} parent=1 // pred_region
      _
    $region13: #{personal_net.1} parent=1 // pred_fallthru
      _
    // Predicated region
    $region14: #{personal_net.1} parent=1 // pred_check
      _
    $region15: #{personal_net.1} parent=1 // pred_check_branch
      %18 = sbr.rel (0) target = $region17
    $region16: #{personal_net.1} parent=1 // pred_region
      _
    $region17: #{personal_net.1} parent=1 // pred_fallthru
      _
    // Predicated region
    $region18: #{personal_net.1} parent=1 // pred_check
      _
    $region19: #{personal_net.1} parent=1 // pred_check_branch
      %20 = sbr.rel (0) target = $region21
    $region20: #{personal_net.1} parent=1 // pred_region
      _
    $region21: #{personal_net.1} parent=1 // pred_fallthru
      _
    %v22 = vld [vmem:[%s0] sm:$0xff]
    %v23 = vpack.c.bf16 %v22, %v22
    %v24 = vld [vmem:[%s1] sm:$0xf]
    %v25 = vld [vmem:[%s1 + $0x4] sm:$0xf]
    %v26 = vld [vmem:[%s1 + $0x8] sm:$0xf]
    %v27 = vld [vmem:[%s1 + $0xc] sm:$0xf]
    %v28 = vld [vmem:[%s1 + $0x10] sm:$0xf]
    %v29 = vld [vmem:[%s1 + $0x14] sm:$0xf]
    %v30 = vld [vmem:[%s1 + $0x18] sm:$0xf]
    %v31 = vld [vmem:[%s1 + $0x1c] sm:$0xf]
    %v32 = vld [vmem:[%s1 + $0x20] sm:$0xf]
    %v33 = vld [vmem:[%s1 + $0x24] sm:$0xf]
    %v34 = vld [vmem:[%s1 + $0x28] sm:$0xf]
    %v35 = vld [vmem:[%s1 + $0x2c] sm:$0xf]
    %v36 = vld [vmem:[%s1 + $0x30] sm:$0xf]
    %v37 = vld [vmem:[%s1 + $0x34] sm:$0xf]
    %v38 = vld [vmem:[%s1 + $0x38] sm:$0xf]
    %v39 = vld [vmem:[%s2] sm:$0x1]
    %v41 = vlaneseq
    %v42 = vshrl.u32 %v41, 7
    %v43 = vsub.s32 0, %v42
    %v44 = vrot.slane %v39, %v43
    %v61 = vunpack.c.l.b16 %v24
    %v62 = vunpack.c.l.b16 %v25
    %v63 = vunpack.c.l.b16 %v26
    %v64 = vunpack.c.l.b16 %v27
    %v65 = vunpack.c.l.b16 %v28
    %v66 = vunpack.c.l.b16 %v29
    %v67 = vunpack.c.l.b16 %v30
    %v68 = vunpack.c.l.b16 %v31
    %v69 = vunpack.c.l.b16 %v32
    %v70 = vunpack.c.l.b16 %v33
    %v71 = vunpack.c.l.b16 %v34
    %v72 = vunpack.c.l.b16 %v35
    %v73 = vunpack.c.l.b16 %v36
    %v74 = vunpack.c.l.b16 %v37
    %v75 = vunpack.c.l.b16 %v38
    %v76 = vpack.c.b16 %v62, %v61
    %v77 = vpack.c.b16 %v64, %v63
    %v78 = vpack.c.b16 %v66, %v65
    %v79 = vpack.c.b16 %v68, %v67
    %v80 = vpack.c.b16 %v70, %v69
    %v81 = vpack.c.b16 %v72, %v71
    %v82 = vpack.c.b16 %v74, %v73
    %v83 = vpack.c.b16 %v75, %v75
    %vm91 = vcmask 982016
    %v93 = vsel %vm91, %v23, 0
    %vm95 = vcmask 1043456
    %v97 = vsel %vm95, %v83, 0
    %99 = vmatprep.subr.bf16.mxu0 0
    %100 = vmatpush1.bf16.msra.mxu0 %v97
    %101 = vmatprep.subr.bf16.mxu0 0
    %102 = vmatpush1.bf16.msra.mxu0 %v82
    %103 = vmatprep.subr.bf16.mxu0 0
    %104 = vmatpush1.bf16.msra.mxu0 %v81
    %105 = vmatprep.subr.bf16.mxu0 0
    %106 = vmatpush1.bf16.msra.mxu0 %v80
    %107 = vmatprep.subr.bf16.mxu0 0
    %108 = vmatpush1.bf16.msra.mxu0 %v79
    %109 = vmatprep.subr.bf16.mxu0 0
    %110 = vmatpush1.bf16.msra.mxu0 %v78
    %111 = vmatprep.subr.bf16.mxu0 0
    %112 = vmatpush1.bf16.msra.mxu0 %v77
    %113 = vmatprep.subr.bf16.mxu0 0
    %114 = vmatpush1.bf16.msra.mxu0 %v76
    %115 = vmatprep.subr.bf16.mxu0 0
    %116 = vmatpush2.bf16.msra.mxu0 0
    %117 = vmatprep.subr.bf16.mxu0 0
    %118 = vmatpush2.bf16.msra.mxu0 0
    %119 = vmatprep.subr.bf16.mxu0 0
    %120 = vmatpush2.bf16.msra.mxu0 0
    %121 = vmatprep.subr.bf16.mxu0 0
    %122 = vmatpush2.bf16.msra.mxu0 0
    %123 = vmatprep.subr.bf16.mxu0 0
    %124 = vmatpush2.bf16.msra.mxu0 0
    %125 = vmatprep.subr.bf16.mxu0 0
    %126 = vmatpush2.bf16.msra.mxu0 0
    %127 = vmatprep.subr.bf16.mxu0 0
    %128 = vmatpush2.bf16.msra.mxu0 0
    %129 = vmatprep.subr.bf16.mxu0 0
    %130 = vmatpush2.bf16.msra.mxu0 0
    %131 = vmatprep.mubr.bf16.mxu0 0
    %132 = vmatmul.mubr.bf16.gmra.mxu0 %v93
    %v133 = vpop.f32.mrf.mxu0
    %v134 = vadd.f32 %v44, %v133
    %v135 = vpop.f32.mrf.mxu0
    %v136 = vpop.f32.mrf.mxu0
    %v137 = vpop.f32.mrf.mxu0
    %138 = vdwg.mxu0
    %v139 = vmax.f32 %v134, 0.0
    %v140 = vpack.c.bf16 %v139, %v139
    %v141 = vld [vmem:[%s3] sm:$0xf]
    %v142 = vld [vmem:[%s3 + $0x4] sm:$0xf]
    %v143 = vld [vmem:[%s3 + $0x8] sm:$0xf]
    %v144 = vld [vmem:[%s3 + $0xc] sm:$0xf]
    %v145 = vld [vmem:[%s3 + $0x10] sm:$0xf]
    %v146 = vld [vmem:[%s3 + $0x14] sm:$0xf]
    %v147 = vld [vmem:[%s3 + $0x18] sm:$0xf]
    %v148 = vld [vmem:[%s3 + $0x1c] sm:$0xf]
    %v149 = vld [vmem:[%s3 + $0x20] sm:$0xf]
    %v150 = vld [vmem:[%s3 + $0x24] sm:$0xf]
    %v151 = vld [vmem:[%s3 + $0x28] sm:$0x3]
    %v152 = vld [vmem:[%s4] sm:$0x1]
    %v154 = vlaneseq
    %v155 = vshrl.u32 %v154, 7
    %v156 = vsub.s32 0, %v155
    %v157 = vrot.slane %v152, %v156
    %v170 = vunpack.c.l.b16 %v141
    %v171 = vunpack.c.l.b16 %v142
    %v172 = vunpack.c.l.b16 %v143
    %v173 = vunpack.c.l.b16 %v144
    %v174 = vunpack.c.l.b16 %v145
    %v175 = vunpack.c.l.b16 %v146
    %v176 = vunpack.c.l.b16 %v147
    %v177 = vunpack.c.l.b16 %v148
    %v178 = vunpack.c.l.b16 %v149
    %v179 = vunpack.c.l.b16 %v150
    %v180 = vunpack.c.l.b16 %v151
    %v181 = vpack.c.b16 %v171, %v170
    %v182 = vpack.c.b16 %v173, %v172
    %v183 = vpack.c.b16 %v175, %v174
    %v184 = vpack.c.b16 %v177, %v176
    %v185 = vpack.c.b16 %v179, %v178
    %v186 = vpack.c.b16 %v180, %v180
    %vm192 = vcmask 687104
    %v194 = vsel %vm192, %v140, 0
    %vm196 = vcmask 1041408
    %v198 = vsel %vm196, %v186, 0
    %200 = vmatprep.subr.bf16.mxu0 0
    %201 = vmatpush1.bf16.msra.mxu0 0
    %202 = vmatprep.subr.bf16.mxu0 0
    %203 = vmatpush1.bf16.msra.mxu0 0
    %204 = vmatprep.subr.bf16.mxu0 0
    %205 = vmatpush1.bf16.msra.mxu0 %v198
    %206 = vmatprep.subr.bf16.mxu0 0
    %207 = vmatpush1.bf16.msra.mxu0 %v185
    %208 = vmatprep.subr.bf16.mxu0 0
    %209 = vmatpush1.bf16.msra.mxu0 %v184
    %210 = vmatprep.subr.bf16.mxu0 0
    %211 = vmatpush1.bf16.msra.mxu0 %v183
    %212 = vmatprep.subr.bf16.mxu0 0
    %213 = vmatpush1.bf16.msra.mxu0 %v182
    %214 = vmatprep.subr.bf16.mxu0 0
    %215 = vmatpush1.bf16.msra.mxu0 %v181
    %216 = vmatprep.subr.bf16.mxu0 0
    %217 = vmatpush2.bf16.msra.mxu0 0
    %218 = vmatprep.subr.bf16.mxu0 0
    %219 = vmatpush2.bf16.msra.mxu0 0
    %220 = vmatprep.subr.bf16.mxu0 0
    %221 = vmatpush2.bf16.msra.mxu0 0
    %222 = vmatprep.subr.bf16.mxu0 0
    %223 = vmatpush2.bf16.msra.mxu0 0
    %224 = vmatprep.subr.bf16.mxu0 0
    %225 = vmatpush2.bf16.msra.mxu0 0
    %226 = vmatprep.subr.bf16.mxu0 0
    %227 = vmatpush2.bf16.msra.mxu0 0
    %228 = vmatprep.subr.bf16.mxu0 0
    %229 = vmatpush2.bf16.msra.mxu0 0
    %230 = vmatprep.subr.bf16.mxu0 0
    %231 = vmatpush2.bf16.msra.mxu0 0
    %232 = vmatprep.mubr.bf16.mxu0 0
    %233 = vmatmul.mubr.bf16.gmra.mxu0 %v194
    %v234 = vpop.f32.mrf.mxu0
    %v235 = vadd.f32 %v157, %v234
    %v236 = vpop.f32.mrf.mxu0
    %v237 = vpop.f32.mrf.mxu0
    %v238 = vpop.f32.mrf.mxu0
    %239 = vdwg.mxu0
    %vm240 = vcmask 80896
    %241 = vst.msk [vmem:[#allocation2] sm:$0xff] %vm240, %v235
    // Predicated region
    $region22: #{personal_net.1} parent=1 // pred_check
      _
    $region23: #{personal_net.1} parent=1 // pred_check_branch
      %243 = sbr.rel (0) target = $region25
    $region24: #{personal_net.1} parent=1 // pred_region
      %s245 = ssub.s32 128, 128
      %246 = vsyncadd [#allocation3], %s245
      %s248 = sshll.u32 [#allocation2], 4
      %s249 = int_to_ptr.vmem [resolvable:$true] %s248
      %251 = dma.vmem_to_hbm [thread:$0]  %s249, 128, %s5, [#allocation3]
    $region25: #{personal_net.1} parent=1 // pred_fallthru
      _
    // Predicated region
    $region26: #{personal_net.1} parent=1 // pred_check
      _
    $region27: #{personal_net.1} parent=1 // pred_check_branch
      %253 = sbr.rel (0) target = $region29
    $region28: #{personal_net.1} parent=1 // pred_region
      %254 = dma.done [#allocation3], 128
    $region29: #{personal_net.1} parent=1 // pred_fallthru
      _
    %255 = vsyncpa [#allocation3], 1

</llo_original>
